<compile_context>
chip_gen: v6e
topology: v6e:2x2x1
jax: 0.10.0
libtpu: 0.0.40
codegen_flags: <defaults>
</compile_context>

<pallas_src>
import functools

import jax
import jax.numpy as jnp
from jax import lax
from jax.experimental import pallas as pl
from jax.experimental.pallas import tpu as pltpu

LANE = 128
SUB = 8
GROUP = SUB * LANE                  # 1024 elements per native (8, 128) f32 tile
MAX_BLOCK_GROUPS = 512              # 512 * 1024 * 4 B = 2 MiB per input per block
MIN_BLOCKS = 2                      # let v7x's two TensorCores both get work
CHUNK = 8                           # groups per in-kernel sub-chunk (stays in vregs)
VMEM_LIMIT = 32 * 1024 * 1024       # explicit scoped-VMEM limit, safe v5e..v7x


def _focal_elementwise(x, t, *, alpha, gamma, logits, binary_targets):
    """Element-wise focal loss in f32, matching the PyTorch module's semantics."""
    if logits:
        # F.binary_cross_entropy_with_logits, numerically stable form.
        bce = jnp.maximum(x, 0.0) - x * t + jnp.log1p(jnp.exp(-jnp.abs(x)))
        pt = jnp.exp(-bce)
        one_minus_pt = 1.0 - pt
    elif binary_targets:
        # Fast path, exact for t in {0, 1}: 1 EUP transcendental per element
        # instead of 3 (log(x), log(1-x), exp(-bce)).
        pt = t * x + (1.0 - t) * (1.0 - x)
        bce = jnp.minimum(-jnp.log(pt), 100.0)   # == BCE with log clamped at -100
        one_minus_pt = 1.0 - pt
    else:
        # F.binary_cross_entropy clamps each log term at -100.
        log_p = jnp.maximum(jnp.log(x), -100.0)
        log_1mp = jnp.maximum(jnp.log(1.0 - x), -100.0)
        bce = -(t * log_p + (1.0 - t) * log_1mp)
        pt = jnp.exp(-bce)
        one_minus_pt = 1.0 - pt

    g = float(gamma)
    if g.is_integer() and g >= 0:
        focal = lax.integer_pow(one_minus_pt, int(g))   # no extra EUP log/exp
    else:
        focal = one_minus_pt ** gamma
    return alpha * focal * bce


def _focal_partial_kernel(x_ref, t_ref, out_ref, *, alpha, gamma, logits,
                          binary_targets):
    """Writes a (1, 8, 128) f32 partial sum of the focal loss for this block."""
    gb = x_ref.shape[0]
    n_full = gb // CHUNK
    rem = gb % CHUNK

    def chunk_sum(start, size, acc):
        x = x_ref[pl.ds(start, size)].astype(jnp.float32)
        t = t_ref[pl.ds(start, size)].astype(jnp.float32)
        f = _focal_elementwise(x, t, alpha=alpha, gamma=gamma, logits=logits,
                               binary_targets=binary_targets)
        return acc + jnp.sum(f, axis=0)

    acc = jnp.zeros((SUB, LANE), jnp.float32)
    if n_full > 0:
        def body(i, acc):
            start = pl.multiple_of(i * CHUNK, CHUNK)
            return chunk_sum(start, CHUNK, acc)
        acc = lax.fori_loop(0, n_full, body, acc, unroll=2)
    if rem > 0:
        acc = chunk_sum(n_full * CHUNK, rem, acc)

    out_ref[...] = acc[None, :, :]


def _focal_map_kernel(x_ref, t_ref, out_ref, *, alpha, gamma, logits,
                      binary_targets):
    """Writes the per-element focal loss for this block (in out_ref.dtype)."""
    gb = x_ref.shape[0]
    n_full = gb // CHUNK
    rem = gb % CHUNK

    def chunk_store(start, size):
        x = x_ref[pl.ds(start, size)].astype(jnp.float32)
        t = t_ref[pl.ds(start, size)].astype(jnp.float32)
        f = _focal_elementwise(x, t, alpha=alpha, gamma=gamma, logits=logits,
                               binary_targets=binary_targets)
        out_ref[pl.ds(start, size)] = f.astype(out_ref.dtype)

    if n_full > 0:
        def body(i, carry):
            start = pl.multiple_of(i * CHUNK, CHUNK)
            chunk_store(start, CHUNK)
            return carry
        lax.fori_loop(0, n_full, body, 0, unroll=2)
    if rem > 0:
        chunk_store(n_full * CHUNK, rem)


def focal_loss(inputs, targets, *, alpha=1.0, gamma=2.0, logits=False,
               reduce=True, binary_targets=False):
    """JAX/Pallas equivalent of focalLoss.forward.

    binary_targets=True enables a mathematically-equivalent (for t in {0, 1})
    fast path on the probability branch with 1 transcendental per element
    instead of 3.  Leave it False for soft targets.
    """
    orig_shape = inputs.shape
    out_dtype = inputs.dtype
    n = inputs.size

    x_flat = inputs.reshape(-1)        # free; keep original dtype, cast in-kernel
    t_flat = targets.reshape(-1)

    ew_kwargs = dict(alpha=float(alpha), gamma=gamma, logits=logits,
                     binary_targets=binary_targets)

    groups = n // GROUP
    if groups > 0:
        num_blocks = min(groups, max(MIN_BLOCKS, pl.cdiv(groups, MAX_BLOCK_GROUPS)))
        block_groups = groups // num_blocks
        kernel_groups = num_blocks * block_groups      # exact: no partial blocks
        n_kernel = kernel_groups * GROUP
    else:
        num_blocks = block_groups = kernel_groups = n_kernel = 0

    kernel_sum = None
    kernel_map = None
    if n_kernel > 0:
        # Aligned bulk: when n is already a multiple of 1024 (the common case)
        # this is a pure metadata reshape with zero extra HBM traffic.  For
        # misaligned n only the <= (num_blocks) leftover groups + sub-1024 tail
        # are finished in XLA; there is no full-array pad and no in-kernel mask.
        xk = x_flat if n_kernel == n else x_flat[:n_kernel]
        tk = t_flat if n_kernel == n else t_flat[:n_kernel]
        xk = xk.reshape(kernel_groups, SUB, LANE)
        tk = tk.reshape(kernel_groups, SUB, LANE)

        grid = (num_blocks,)
        in_specs = [
            pl.BlockSpec((block_groups, SUB, LANE), lambda i: (i, 0, 0)),
            pl.BlockSpec((block_groups, SUB, LANE), lambda i: (i, 0, 0)),
        ]
        compiler_params = pltpu.CompilerParams(
            dimension_semantics=("parallel",),
            vmem_limit_bytes=VMEM_LIMIT)

        if reduce:
            kernel = functools.partial(_focal_partial_kernel, **ew_kwargs)
            partials = pl.pallas_call(
                kernel,
                out_shape=jax.ShapeDtypeStruct((num_blocks, SUB, LANE),
                                               jnp.float32),
                grid_spec=pltpu.PrefetchScalarGridSpec(
                    num_scalar_prefetch=0,
                    grid=grid,
                    in_specs=in_specs,
                    out_specs=pl.BlockSpec((1, SUB, LANE), lambda i: (i, 0, 0)),
                ),
                compiler_params=compiler_params,
            )(xk, tk)
            kernel_sum = jnp.sum(partials)          # tiny final reduction in XLA
        else:
            kernel = functools.partial(_focal_map_kernel, **ew_kwargs)
            kernel_map = pl.pallas_call(
                kernel,
                out_shape=jax.ShapeDtypeStruct((kernel_groups, SUB, LANE),
                                               out_dtype),
                grid_spec=pltpu.PrefetchScalarGridSpec(
                    num_scalar_prefetch=0,
                    grid=grid,
                    in_specs=in_specs,
                    out_specs=pl.BlockSpec((block_groups, SUB, LANE),
                                           lambda i: (i, 0, 0)),
                ),
                compiler_params=compiler_params,
            )(xk, tk)

    # XLA tail (< 1024 + num_blocks*1024 elements); fuses into a small
    # read-only reduction for reduce=True.
    tail = None
    if n_kernel < n:
        xt = x_flat[n_kernel:].astype(jnp.float32)
        tt = t_flat[n_kernel:].astype(jnp.float32)
        tail = _focal_elementwise(xt, tt, **ew_kwargs)

    if reduce:
        total = jnp.float32(0.0)
        if kernel_sum is not None:
            total = total + kernel_sum
        if tail is not None:
            total = total + jnp.sum(tail)
        return (total / jnp.float32(n)).astype(out_dtype)
    else:
        parts = []
        if kernel_map is not None:
            parts.append(kernel_map.reshape(-1))
        if tail is not None:
            parts.append(tail.astype(out_dtype))
        out = parts[0] if len(parts) == 1 else jnp.concatenate(parts)
        return out.reshape(orig_shape)


def _focal_loss_ref(inputs, targets, *, alpha=1.0, gamma=2.0, logits=False,
                    reduce=True):
    x = inputs.astype(jnp.float32)
    t = targets.astype(jnp.float32)
    f = _focal_elementwise(x, t, alpha=float(alpha), gamma=gamma, logits=logits,
                           binary_targets=False)
    return jnp.mean(f) if reduce else f


if __name__ == "__main__":
    key = jax.random.PRNGKey(0)
    k1, k2, k3, k4, k5, k6 = jax.random.split(key, 6)

    # (N, C, H, W) = (2, 4, 16, 16): per-pixel probabilities + binary targets.
    raw = jax.random.normal(k1, (2, 4, 16, 16), dtype=jnp.float32)
    probs = jax.nn.sigmoid(raw)               # module default logits=False
    tgts = jax.random.bernoulli(k2, 0.5, (2, 4, 16, 16)).astype(jnp.float32)

    # Default config: alpha=1, gamma=2, logits=False, reduce=True.
    out = jax.block_until_ready(focal_loss(probs, tgts))
    ref = _focal_loss_ref(probs, tgts)
    assert jnp.allclose(out, ref, rtol=1e-5, atol=1e-6), (out, ref)

    # reduce=False (per-element loss map, returned in the input dtype).
    out_map = jax.block_until_ready(focal_loss(probs, tgts, reduce=False))
    ref_map = _focal_loss_ref(probs, tgts, reduce=False)
    assert out_map.dtype == probs.dtype
    assert jnp.allclose(out_map, ref_map, rtol=1e-5, atol=1e-6)

    # Binary-targets fast path (1 transcendental/elem) -- exact for t in {0,1}.
    out_fast = jax.block_until_ready(focal_loss(probs, tgts, binary_targets=True))
    assert jnp.allclose(out_fast, ref, rtol=1e-4, atol=1e-6), (out_fast, ref)

    # Larger aligned shape: exercises multi-chunk fori_loop inside the kernel.
    raw_big = jax.random.normal(k5, (4, 4, 32, 32), dtype=jnp.float32)
    probs_big = jax.nn.sigmoid(raw_big)
    tgts_big = jax.random.bernoulli(k6, 0.5, (4, 4, 32, 32)).astype(jnp.float32)
    out_big = jax.block_until_ready(focal_loss(probs_big, tgts_big))
    ref_big = _focal_loss_ref(probs_big, tgts_big)
    assert jnp.allclose(out_big, ref_big, rtol=1e-5, atol=1e-6), (out_big, ref_big)
    out_big_map = jax.block_until_ready(focal_loss(probs_big, tgts_big, reduce=False))
    ref_big_map = _focal_loss_ref(probs_big, tgts_big, reduce=False)
    assert jnp.allclose(out_big_map, ref_big_map, rtol=1e-5, atol=1e-6)

    # Non-tile-aligned size (aligned-bulk kernel + XLA tail, no pad, no mask).
    raw2 = jax.random.normal(k3, (2, 3, 15, 17), dtype=jnp.float32)
    probs2 = jax.nn.sigmoid(raw2)
    tgts2 = jax.random.bernoulli(k4, 0.5, (2, 3, 15, 17)).astype(jnp.float32)
    out2 = jax.block_until_ready(focal_loss(probs2, tgts2))
    ref2 = _focal_loss_ref(probs2, tgts2)
    assert jnp.allclose(out2, ref2, rtol=1e-5, atol=1e-6), (out2, ref2)
    out2_map = jax.block_until_ready(focal_loss(probs2, tgts2, reduce=False))
    ref2_map = _focal_loss_ref(probs2, tgts2, reduce=False)
    assert jnp.allclose(out2_map, ref2_map, rtol=1e-5, atol=1e-6)

    # logits=True with a non-aligned shape.
    out3 = jax.block_until_ready(focal_loss(raw2, tgts2, logits=True))
    ref3 = _focal_loss_ref(raw2, tgts2, logits=True)
    assert jnp.allclose(out3, ref3, rtol=1e-5, atol=1e-6), (out3, ref3)

    print("KERNEL_OK")
</pallas_src>

<mosaic_0001>
module attributes {stable_mosaic.version = 11 : i64} {
  func.func @_focal_partial_kernel(%arg0: i32, %arg1: memref<1x8x128xf32, #tpu.memory_space<vmem>>, %arg2: memref<1x8x128xf32, #tpu.memory_space<vmem>>, %arg3: memref<1x8x128xf32, #tpu.memory_space<vmem>>) attributes {dimension_semantics = [#tpu.dimension_semantics<parallel>], iteration_bounds = array<i64: 2>, scalar_prefetch = 0 : i64, scratch_operands = 0 : i64, tpu.core_type = #tpu.core_type<tc>, window_params = [{transform_indices = @transform_0, window_bounds = array<i64: 1, 8, 128>}, {transform_indices = @transform_1, window_bounds = array<i64: 1, 8, 128>}, {transform_indices = @transform_2, window_bounds = array<i64: 1, 8, 128>}]} {
    %cst = arith.constant 0.000000e+00 : f32
    %0 = vector.broadcast %cst : f32 to vector<8x128xf32>
    %c0 = arith.constant 0 : index
    %c0_0 = arith.constant 0 : index
    %c0_1 = arith.constant 0 : index
    %1 = vector.load %arg1[%c0, %c0_0, %c0_1] : memref<1x8x128xf32, #tpu.memory_space<vmem>>, vector<1x8x128xf32>
    %c0_2 = arith.constant 0 : index
    %c0_3 = arith.constant 0 : index
    %c0_4 = arith.constant 0 : index
    %2 = vector.load %arg2[%c0_2, %c0_3, %c0_4] : memref<1x8x128xf32, #tpu.memory_space<vmem>>, vector<1x8x128xf32>
    %3 = math.log %1 : vector<1x8x128xf32>
    %cst_5 = arith.constant -1.000000e+02 : f32
    %4 = vector.broadcast %cst_5 : f32 to vector<1x8x128xf32>
    %5 = arith.maximumf %3, %4 : vector<1x8x128xf32>
    %cst_6 = arith.constant 1.000000e+00 : f32
    %6 = vector.broadcast %cst_6 : f32 to vector<1x8x128xf32>
    %7 = arith.subf %6, %1 : vector<1x8x128xf32>
    %8 = math.log %7 : vector<1x8x128xf32>
    %cst_7 = arith.constant -1.000000e+02 : f32
    %9 = vector.broadcast %cst_7 : f32 to vector<1x8x128xf32>
    %10 = arith.maximumf %8, %9 : vector<1x8x128xf32>
    %11 = arith.mulf %2, %5 : vector<1x8x128xf32>
    %cst_8 = arith.constant 1.000000e+00 : f32
    %12 = vector.broadcast %cst_8 : f32 to vector<1x8x128xf32>
    %13 = arith.subf %12, %2 : vector<1x8x128xf32>
    %14 = arith.mulf %13, %10 : vector<1x8x128xf32>
    %15 = arith.addf %11, %14 : vector<1x8x128xf32>
    %cst_9 = arith.constant 0.000000e+00 : f32
    %16 = vector.broadcast %cst_9 : f32 to vector<1x8x128xf32>
    %17 = arith.subf %16, %15 : vector<1x8x128xf32>
    %cst_10 = arith.constant 0.000000e+00 : f32
    %18 = vector.broadcast %cst_10 : f32 to vector<1x8x128xf32>
    %19 = arith.subf %18, %17 : vector<1x8x128xf32>
    %20 = math.exp %19 : vector<1x8x128xf32>
    %cst_11 = arith.constant 1.000000e+00 : f32
    %21 = vector.broadcast %cst_11 : f32 to vector<1x8x128xf32>
    %22 = arith.subf %21, %20 : vector<1x8x128xf32>
    %23 = arith.mulf %22, %22 : vector<1x8x128xf32>
    %cst_12 = arith.constant 1.000000e+00 : f32
    %24 = vector.broadcast %cst_12 : f32 to vector<1x8x128xf32>
    %25 = arith.mulf %24, %23 : vector<1x8x128xf32>
    %26 = arith.mulf %25, %17 : vector<1x8x128xf32>
    %cst_13 = arith.constant dense<0.000000e+00> : vector<8x128xf32>
    %27 = vector.multi_reduction <add>, %26, %cst_13 [0] : vector<1x8x128xf32> to vector<8x128xf32>
    %28 = arith.addf %0, %27 : vector<8x128xf32>
    %29 = vector.shape_cast %28 : vector<8x128xf32> to vector<1x8x128xf32>
    %c0_14 = arith.constant 0 : index
    %c0_15 = arith.constant 0 : index
    %c0_16 = arith.constant 0 : index
    %30 = vector.load %arg3[%c0_14, %c0_15, %c0_16] : memref<1x8x128xf32, #tpu.memory_space<vmem>>, vector<1x8x128xf32>
    tpu.vector_store %arg3[%c0_14, %c0_15, %c0_16], %29 {strides = array<i32>} : memref<1x8x128xf32, #tpu.memory_space<vmem>>, vector<1x8x128xf32>,
    return
  }
  func.func @transform_0(%arg0: i32) -> (i32, i32, i32) {
    %c0_i32 = arith.constant 0 : i32
    %c0_i32_0 = arith.constant 0 : i32
    %c0_i32_1 = arith.constant 0 : i32
    return %arg0, %c0_i32, %c0_i32_0 : i32, i32, i32
  }
  func.func @transform_1(%arg0: i32) -> (i32, i32, i32) {
    %c0_i32 = arith.constant 0 : i32
    %c0_i32_0 = arith.constant 0 : i32
    %c0_i32_1 = arith.constant 0 : i32
    return %arg0, %c0_i32, %c0_i32_0 : i32, i32, i32
  }
  func.func @transform_2(%arg0: i32) -> (i32, i32, i32) {
    %c0_i32 = arith.constant 0 : i32
    %c0_i32_0 = arith.constant 0 : i32
    %c0_i32_1 = arith.constant 0 : i32
    return %arg0, %c0_i32, %c0_i32_0 : i32, i32, i32
  }
}

</mosaic_0001>

<llo_original>
// kernel: tpu_custom_call.1
$region0: #{tpu_custom_call.1}
  #allocation0 [shape = 'u32[]', space=smem, size = 0x4, offset = 0x4, fixed_abs, tag = 'smem constant byte address 0x4 - core index']
  #allocation1 [shape = 'u32[144,128]{1,0:T(1,128)}', space=vmem, size = 0x12000, scoped, tag = 'internal scratch']
  %s0 = inlined_call_operand.hbm [shape: f32[2,8,128], index: 0, kind: input, shape index: {}]
  %s1 = inlined_call_operand.hbm [shape: f32[2,8,128], index: 1, kind: input, shape index: {}]
  %s2 = inlined_call_operand.hbm [shape: f32[2,8,128], index: 2, kind: output, shape index: {}]
  %s3 = sld [smem:[#allocation0]]
  $region49: #{tpu_custom_call.1} parent=0
    _
  %s5 = ssub.s32 1, %s3
  %s6 = scalar_select 0, %s5, %s3
  $region1: #{tpu_custom_call.1} parent=0
    #allocation2 [shape = 'u8[8192]{0}', space=vmem, size = 0x2000, scoped, tag = 'input window, operand 0']
    #allocation3 [shape = 's32[2]{0}', space=sflag, size = 0x8, scoped, tag = 'scoped memory for tpu_custom_call.1']
    #allocation4 [shape = 's32[2]{0}', space=sflag, size = 0x8, scoped, tag = 'scoped memory for tpu_custom_call.1']
    #allocation5 [shape = 'u8[8192]{0}', space=vmem, size = 0x2000, scoped, tag = 'input window, operand 1']
    #allocation6 [shape = 's32[2]{0}', space=sflag, size = 0x8, scoped, tag = 'scoped memory for tpu_custom_call.1']
    #allocation7 [shape = 'u8[8192]{0}', space=vmem, size = 0x2000, scoped, tag = 'output window, operand 0']
    %7 = vsyncpa [#allocation3], 0
    %s8 = scalar_lea.sflag [#allocation3], 1
    %9 = vsyncpa %s8, 0
    %10 = vsyncpa [#allocation6], 0
    %s11 = scalar_lea.sflag [#allocation6], 1
    %12 = vsyncpa %s11, 0
    %13 = vsyncpa [#allocation4], 0
    %s14 = scalar_lea.sflag [#allocation4], 1
    %15 = vsyncpa %s14, 0
    loop: start=0, step=1, limit=4
    $region2: #{tpu_custom_call.1} parent=1 // loop_pre_header
      _
    $region3: #{tpu_custom_call.1} parent=1 // loop_header
      %s17 = sphi 0, %s21
      %p18 = scmp.ge.s32.totalorder %s17, 4
      %s27 = sphi 0, %s29
      %s30 = sphi 0, %s27
      %s31 = sphi 0, %s30
      %s47 = sphi 0, %s31
      %s53 = sphi 0, %s55
      %s56 = sphi 0, %s53
      %s57 = sphi 0, %s56
      %s73 = sphi 0, %s57
      %s79 = sphi 0, %s81
      %s82 = sphi 0, %s79
      %s83 = sphi 0, %s82
      %s99 = sphi 0, %s83
    $region4: #{tpu_custom_call.1} parent=1 // loop_header_branch
      %20 = sbr.rel (%p18) target = $region8
    $region5: #{tpu_custom_call.1} parent=1 // loop_body
      %s22 = ssub.s32 %s17, 1
      %s23 = ssub.s32 %s17, 2
      %s24 = sadd.s32 %s17, 1
      %s25 = ssub.s32 %s17, %s24
      %p26 = scmp.eq.s32.totalorder %s25, 0
      %s28 = sadd.s32 %s27, 1
      %s29 = scalar_select %p26, %s27, %s28
      %p32 = pneg %p26
      %p33 = scmp.eq.s32.totalorder %s17, 1
      %p34 = por %p32, %p33
      %p35 = scmp.ne.s32.totalorder %s27, %s30
      %p36 = scmp.eq.s32.totalorder %s17, 0
      %p37 = por %p35, %p36
      %p38 = scmp.ne.s32.totalorder %s27, %s30
      %p39 = scmp.eq.s32.totalorder %s22, 1
      %p40 = por %p38, %p39
      %p41 = scmp.ne.s32.totalorder %s30, %s31
      %p42 = scmp.eq.s32.totalorder %s22, 0
      %p43 = por %p41, %p42
      %p44 = scmp.ne.s32.totalorder %s30, %s31
      %p45 = scmp.eq.s32.totalorder %s23, 1
      %p46 = por %p44, %p45
      %p48 = scmp.ne.s32.totalorder %s31, %s47
      %p49 = scmp.eq.s32.totalorder %s23, 0
      %p50 = por %p48, %p49
      %s51 = ssub.s32 %s17, %s24
      %p52 = scmp.eq.s32.totalorder %s51, 0
      %s54 = sadd.s32 %s53, 1
      %s55 = scalar_select %p52, %s53, %s54
      %p58 = pneg %p52
      %p59 = scmp.eq.s32.totalorder %s17, 1
      %p60 = por %p58, %p59
      %p61 = scmp.ne.s32.totalorder %s53, %s56
      %p62 = scmp.eq.s32.totalorder %s17, 0
      %p63 = por %p61, %p62
      %p64 = scmp.ne.s32.totalorder %s53, %s56
      %p65 = scmp.eq.s32.totalorder %s22, 1
      %p66 = por %p64, %p65
      %p67 = scmp.ne.s32.totalorder %s56, %s57
      %p68 = scmp.eq.s32.totalorder %s22, 0
      %p69 = por %p67, %p68
      %p70 = scmp.ne.s32.totalorder %s56, %s57
      %p71 = scmp.eq.s32.totalorder %s23, 1
      %p72 = por %p70, %p71
      %p74 = scmp.ne.s32.totalorder %s57, %s73
      %p75 = scmp.eq.s32.totalorder %s23, 0
      %p76 = por %p74, %p75
      %s77 = ssub.s32 %s17, %s24
      %p78 = scmp.eq.s32.totalorder %s77, 0
      %s80 = sadd.s32 %s79, 1
      %s81 = scalar_select %p78, %s79, %s80
      %p84 = pneg %p78
      %p85 = scmp.eq.s32.totalorder %s17, 1
      %p86 = por %p84, %p85
      %p87 = scmp.ne.s32.totalorder %s79, %s82
      %p88 = scmp.eq.s32.totalorder %s17, 0
      %p89 = por %p87, %p88
      %p90 = scmp.ne.s32.totalorder %s79, %s82
      %p91 = scmp.eq.s32.totalorder %s22, 1
      %p92 = por %p90, %p91
      %p93 = scmp.ne.s32.totalorder %s82, %s83
      %p94 = scmp.eq.s32.totalorder %s22, 0
      %p95 = por %p93, %p94
      %p96 = scmp.ne.s32.totalorder %s82, %s83
      %p97 = scmp.eq.s32.totalorder %s23, 1
      %p98 = por %p96, %p97
      %p100 = scmp.ne.s32.totalorder %s83, %s99
      %p101 = scmp.eq.s32.totalorder %s23, 0
      %p102 = por %p100, %p101
      %p103 = scmp.le.s32.totalorder 1, %s17
      %p104 = scmp.lt.s32.totalorder %s17, 3
      %p105 = pnand %p103, %p104
      %p106 = pneg %p105
      // Predicated region
      $region9: #{tpu_custom_call.1} parent=5 // pred_check
        _
      $region10: #{tpu_custom_call.1} parent=5 // pred_check_branch
        %108 = sbr.rel (%p105) target = $region12
      $region11: #{tpu_custom_call.1} parent=5 // pred_region
        %s109 = ssub.s32 %s17, 1
      $region12: #{tpu_custom_call.1} parent=5 // pred_fallthru
        _
      %p110 = scmp.lt.s32.totalorder %s17, 2
      // Predicated region
      $region13: #{tpu_custom_call.1} parent=5 // pred_check
        %p111 = pneg %p110
      $region14: #{tpu_custom_call.1} parent=5 // pred_check_branch
        %113 = sbr.rel (%p111) target = $region16
      $region15: #{tpu_custom_call.1} parent=5 // pred_region
        // Predicated region
        $region17: #{tpu_custom_call.1} parent=15 // pred_check
          %p114 = pneg %p37
        $region18: #{tpu_custom_call.1} parent=15 // pred_check_branch
          %116 = sbr.rel (%p114) target = $region20
        $region19: #{tpu_custom_call.1} parent=15 // pred_region
          %s117 = sand.u32 %s27, 1
          %s118 = scalar_lea.sflag [#allocation3], %s117
          %s119 = sand.u32 %s27, 1
          %s120 = smul.addr %s119, 8
          %s121 = scalar_lea.vmem [#allocation2], %s120
          %s123 = ssub.s32 128, 128
          %124 = vsyncadd %s118, %s123
          %s125 = smul.addr %s17, 128
          %s126 = scalar_lea.hbm %s0, %s125
          %s128 = sshll.u32 %s121, 4
          %s129 = int_to_ptr.vmem [resolvable:$true] %s128
          %131 = dma.hbm_to_vmem [thread:$0]  %s126, 128, %s129, %s118
        $region20: #{tpu_custom_call.1} parent=15 // pred_fallthru
          _
        // Predicated region
        $region21: #{tpu_custom_call.1} parent=15 // pred_check
          %p132 = pneg %p63
        $region22: #{tpu_custom_call.1} parent=15 // pred_check_branch
          %134 = sbr.rel (%p132) target = $region24
        $region23: #{tpu_custom_call.1} parent=15 // pred_region
          %s135 = sand.u32 %s53, 1
          %s136 = scalar_lea.sflag [#allocation6], %s135
          %s137 = sand.u32 %s53, 1
          %s138 = smul.addr %s137, 8
          %s139 = scalar_lea.vmem [#allocation5], %s138
          %s141 = ssub.s32 128, 128
          %142 = vsyncadd %s136, %s141
          %s143 = smul.addr %s17, 128
          %s144 = scalar_lea.hbm %s1, %s143
          %s146 = sshll.u32 %s139, 4
          %s147 = int_to_ptr.vmem [resolvable:$true] %s146
          %149 = dma.hbm_to_vmem [thread:$0]  %s144, 128, %s147, %s136
        $region24: #{tpu_custom_call.1} parent=15 // pred_fallthru
          _
      $region16: #{tpu_custom_call.1} parent=5 // pred_fallthru
        _
      %p150 = scmp.le.s32.totalorder 1, %s17
      %p151 = scmp.lt.s32.totalorder %s17, 3
      %p152 = pnand %p150, %p151
      %p153 = pneg %p152
      // Predicated region
      $region25: #{tpu_custom_call.1} parent=5 // pred_check
        _
      $region26: #{tpu_custom_call.1} parent=5 // pred_check_branch
        %155 = sbr.rel (%p152) target = $region28
      $region27: #{tpu_custom_call.1} parent=5 // pred_region
        %s156 = ssub.s32 %s17, 1
        %s157 = sand.u32 %s30, 1
        %s158 = scalar_lea.sflag [#allocation3], %s157
        %s159 = sand.u32 %s30, 1
        %s160 = smul.addr %s159, 8
        %s161 = scalar_lea.vmem [#allocation2], %s160
        // Predicated region
        $region29: #{tpu_custom_call.1} parent=27 // pred_check
          %p162 = pneg %p43
        $region30: #{tpu_custom_call.1} parent=27 // pred_check_branch
          %164 = sbr.rel (%p162) target = $region32
        $region31: #{tpu_custom_call.1} parent=27 // pred_region
          %165 = dma.done %s158, 128
        $region32: #{tpu_custom_call.1} parent=27 // pred_fallthru
          _
        %s166 = sand.u32 %s56, 1
        %s167 = scalar_lea.sflag [#allocation6], %s166
        %s168 = sand.u32 %s56, 1
        %s169 = smul.addr %s168, 8
        %s170 = scalar_lea.vmem [#allocation5], %s169
        // Predicated region
        $region33: #{tpu_custom_call.1} parent=27 // pred_check
          %p171 = pneg %p69
        $region34: #{tpu_custom_call.1} parent=27 // pred_check_branch
          %173 = sbr.rel (%p171) target = $region36
        $region35: #{tpu_custom_call.1} parent=27 // pred_region
          %174 = dma.done %s167, 128
        $region36: #{tpu_custom_call.1} parent=27 // pred_fallthru
          _
        %s175 = sand.u32 %s30, 1
        %s176 = scalar_lea.sflag [#allocation3], %s175
        %s177 = sand.u32 %s30, 1
        %s178 = smul.addr %s177, 8
        %s179 = scalar_lea.vmem [#allocation2], %s178
        %p180 = pneg %p43
        %p181 = pneg %p40
        %s182 = sand.u32 %s56, 1
        %s183 = scalar_lea.sflag [#allocation6], %s182
        %s184 = sand.u32 %s56, 1
        %s185 = smul.addr %s184, 8
        %s186 = scalar_lea.vmem [#allocation5], %s185
        %p187 = pneg %p69
        %p188 = pneg %p66
        %p189 = pneg %p95
        %p190 = pneg %p92
        %s191 = sand.u32 %s82, 1
        %s192 = scalar_lea.sflag [#allocation4], %s191
        %s193 = sand.u32 %s82, 1
        %s194 = smul.addr %s193, 8
        %s195 = scalar_lea.vmem [#allocation7], %s194
        %v196 = vld [vmem:[%s161] sm:$0xff]
        %v197 = vld [vmem:[%s170] sm:$0xff]
        %v198 = vlog2.pop %v196
        %v199 = vmul.f32 %v198, 0.6931472
        %v200 = vmax.f32 %v199, -100.0
        %v201 = vsub.f32 1.0, %v196
        %v202 = vlog2.pop %v201
        %v203 = vmul.f32 %v202, 0.6931472
        %v204 = vmax.f32 %v203, -100.0
        %v205 = vmul.f32 %v197, %v200
        %v206 = vsub.f32 1.0, %v197
        %v207 = vmul.f32 %v206, %v204
        %v208 = vadd.f32 %v205, %v207
        %v209 = vsub.f32 0.0, %v208
        %v210 = vsub.f32 0.0, %v209
        %v211 = vmul.f32 %v210, 1.442695
        %v212 = vpow.pop %v211
        %v213 = vsub.f32 1.0, %v212
        %v214 = vmul.f32 %v213, %v213
        %v215 = vmul.f32 %v214, %v209
        %v216 = vadd.f32 %v215, 0.0
        %v217 = vadd.f32 %v216, 0.0
        %218 = vst [vmem:[%s195] sm:$0xff] %v217
        %s219 = sand.u32 %s82, 1
        %s220 = scalar_lea.sflag [#allocation4], %s219
        %s221 = sand.u32 %s82, 1
        %s222 = smul.addr %s221, 8
        %s223 = scalar_lea.vmem [#allocation7], %s222
        // Predicated region
        $region37: #{tpu_custom_call.1} parent=27 // pred_check
          %p224 = pneg %p92
        $region38: #{tpu_custom_call.1} parent=27 // pred_check_branch
          %226 = sbr.rel (%p224) target = $region40
        $region39: #{tpu_custom_call.1} parent=27 // pred_region
          %s228 = ssub.s32 128, 128
          %229 = vsyncadd %s220, %s228
          %s230 = smul.addr %s22, 128
          %s231 = scalar_lea.hbm %s2, %s230
          %s233 = sshll.u32 %s223, 4
          %s234 = int_to_ptr.vmem [resolvable:$true] %s233
          %236 = dma.vmem_to_hbm [thread:$0]  %s234, 128, %s231, %s220
        $region40: #{tpu_custom_call.1} parent=27 // pred_fallthru
          _
      $region28: #{tpu_custom_call.1} parent=5 // pred_fallthru
        _
      %p237 = scmp.le.s32.totalorder 2, %s17
      // Predicated region
      $region41: #{tpu_custom_call.1} parent=5 // pred_check
        %p238 = pneg %p237
      $region42: #{tpu_custom_call.1} parent=5 // pred_check_branch
        %240 = sbr.rel (%p238) target = $region44
      $region43: #{tpu_custom_call.1} parent=5 // pred_region
        %s241 = ssub.s32 %s17, 2
        // Predicated region
        $region45: #{tpu_custom_call.1} parent=43 // pred_check
          %p242 = pneg %p98
        $region46: #{tpu_custom_call.1} parent=43 // pred_check_branch
          %244 = sbr.rel (%p242) target = $region48
        $region47: #{tpu_custom_call.1} parent=43 // pred_region
          %s245 = sand.u32 %s83, 1
          %s246 = scalar_lea.sflag [#allocation4], %s245
          %s247 = sand.u32 %s83, 1
          %s248 = smul.addr %s247, 8
          %s249 = scalar_lea.vmem [#allocation7], %s248
          %250 = dma.done %s246, 128
        $region48: #{tpu_custom_call.1} parent=43 // pred_fallthru
          _
      $region44: #{tpu_custom_call.1} parent=5 // pred_fallthru
        _
    $region6: #{tpu_custom_call.1} parent=1 // loop_footer
      %s21 = sadd.s32 1, %s17
    $region7: #{tpu_custom_call.1} parent=1 // loop_footer_branch
      %16 = sbr.rel target = $region3
    $region8: #{tpu_custom_call.1} parent=1 // loop_exit
      _
    %251 = vsyncpa [#allocation3], 1
    %s252 = scalar_lea.sflag [#allocation3], 1
    %253 = vsyncpa %s252, 1
    %254 = vsyncpa [#allocation6], 1
    %s255 = scalar_lea.sflag [#allocation6], 1
    %256 = vsyncpa %s255, 1
    %257 = vsyncpa [#allocation4], 1
    %s258 = scalar_lea.sflag [#allocation4], 1
    %259 = vsyncpa %s258, 1

</llo_original>
